<compile_context>
chip_gen: v7x
topology: tpu7x:2x2x1
jax: 0.10.0
libtpu: 0.0.40
codegen_flags: <defaults>
</compile_context>

<pallas_src>
import jax
import jax.numpy as jnp
from jax.experimental import pallas as pl
from jax.experimental.pallas import tpu as pltpu

KH = KW = 4
PAD = 1
EPS = 1e-5
NEG_SLOPE = 0.2
LANE = 128
MAX_TILE_M = 512
MAX_TILE_K = 512


def _round_up(x, m):
    return (x + m - 1) // m * m


# ---------------------------------------------------------------------------
# Kernels
# ---------------------------------------------------------------------------
def _conv_stats_kernel(x_ref, w_ref, conv_ref, stats_ref):
    """Pass 1 (BN path): conv tile = sum_k X_tile @ W_tile, plus per-tile BN partials."""
    kk = pl.program_id(1)

    @pl.when(kk == 0)
    def _():
        conv_ref[...] = jnp.zeros_like(conv_ref)

    conv_ref[...] += jnp.dot(x_ref[...], w_ref[...],
                             preferred_element_type=jnp.float32)

    @pl.when(kk == pl.num_programs(1) - 1)
    def _():
        conv = conv_ref[...]
        stats_ref[...] = jnp.zeros_like(stats_ref)
        stats_ref[0:1, :] = jnp.sum(conv, axis=0, keepdims=True)          # per-channel sum
        stats_ref[1:2, :] = jnp.sum(conv * conv, axis=0, keepdims=True)   # per-channel sumsq


def _bn_lrelu_kernel(conv_ref, ss_ref, o_ref):
    """Pass 2 (BN path): y = conv*scale + shift, then LeakyReLU(0.2)."""
    y = conv_ref[...] * ss_ref[0:1, :] + ss_ref[1:2, :]
    o_ref[...] = jnp.where(y >= 0, y, NEG_SLOPE * y)


def _conv_bias_lrelu_kernel(x_ref, w_ref, b_ref, o_ref):
    """Single pass (no BN): conv + bias + LeakyReLU(0.2)."""
    kk = pl.program_id(1)

    @pl.when(kk == 0)
    def _():
        o_ref[...] = jnp.zeros_like(o_ref)

    o_ref[...] += jnp.dot(x_ref[...], w_ref[...],
                          preferred_element_type=jnp.float32)

    @pl.when(kk == pl.num_programs(1) - 1)
    def _():
        y = o_ref[...] + b_ref[0:1, :]
        o_ref[...] = jnp.where(y >= 0, y, NEG_SLOPE * y)


# ---------------------------------------------------------------------------
# Host-side glue
# ---------------------------------------------------------------------------
def _im2col(x, stride):
    """x: (N, C, H, W) -> (N*OH*OW, C*KH*KW), rows (n, oh, ow), cols (c, kh, kw)."""
    n, c, h, w = x.shape
    oh = (h + 2 * PAD - KH) // stride + 1
    ow = (w + 2 * PAD - KW) // stride + 1
    xp = jnp.pad(x, ((0, 0), (0, 0), (PAD, PAD), (PAD, PAD)))
    cols = []
    for kh in range(KH):
        for kw in range(KW):
            cols.append(xp[:, :, kh:kh + stride * oh:stride, kw:kw + stride * ow:stride])
    patches = jnp.stack(cols, axis=0).reshape(KH, KW, n, c, oh, ow)
    patches = jnp.transpose(patches, (2, 4, 5, 3, 0, 1))  # (N, OH, OW, C, KH, KW)
    return patches.reshape(n * oh * ow, c * KH * KW), (n, oh, ow)


def conv_block_forward(x, weight, bias, gamma, beta, *, stride=2, use_batchnorm=True):
    """x: (N, in_ch, H, W) NCHW; weight: (out_ch, in_ch, 4, 4). Returns NCHW output."""
    out_ch = weight.shape[0]
    x_cols, (n, oh, ow) = _im2col(x.astype(jnp.float32), stride)
    m, k = x_cols.shape

    # ---- MXU / lane-alignment padding & tile selection ---------------------
    c_pad = _round_up(out_ch, LANE)

    k_pad0 = _round_up(k, LANE)
    tile_k = k_pad0 if k_pad0 <= MAX_TILE_K else MAX_TILE_K
    k_pad = _round_up(k_pad0, tile_k)

    m_pad0 = _round_up(m, 8)
    tile_m = m_pad0 if m_pad0 <= MAX_TILE_M else MAX_TILE_M
    m_pad = _round_up(m, tile_m)

    x_cols = jnp.pad(x_cols, ((0, m_pad - m), (0, k_pad - k)))
    w_mat = weight.reshape(out_ch, -1).T.astype(jnp.float32)              # (K, out_ch)
    w_mat = jnp.pad(w_mat, ((0, k_pad - k), (0, c_pad - out_ch)))         # (K_pad, C_pad)

    grid_m = m_pad // tile_m
    grid_k = k_pad // tile_k

    if use_batchnorm:
        # ---- Pass 1: conv + per-tile BN partial sums (M axis fully parallel) ----
        conv_pad, stats = pl.pallas_call(
            _conv_stats_kernel,
            out_shape=(
                jax.ShapeDtypeStruct((m_pad, c_pad), jnp.float32),
                jax.ShapeDtypeStruct((grid_m * 8, c_pad), jnp.float32),
            ),
            grid=(grid_m, grid_k),
            in_specs=[
                pl.BlockSpec((tile_m, tile_k), lambda i, kk: (i, kk)),
                pl.BlockSpec((tile_k, c_pad), lambda i, kk: (kk, 0)),
            ],
            out_specs=(
                pl.BlockSpec((tile_m, c_pad), lambda i, kk: (i, 0)),
                pl.BlockSpec((8, c_pad), lambda i, kk: (i, 0)),
            ),
            compiler_params=pltpu.CompilerParams(
                dimension_semantics=("parallel", "arbitrary")),
        )(x_cols, w_mat)

        # ---- Tiny cross-tile reduction + scale/shift folding (XLA side) --------
        # Padded rows/lanes contribute exactly zero (no bias added under BN),
        # and the divisor stays the true M, so stats are unbiased by padding.
        stats = stats.reshape(grid_m, 8, c_pad)
        tot = jnp.sum(stats[:, 0, :], axis=0)
        tot_sq = jnp.sum(stats[:, 1, :], axis=0)
        mean = tot / m
        var = jnp.maximum(tot_sq / m - mean * mean, 0.0)   # biased var, as in BN training
        inv_std = jax.lax.rsqrt(var + EPS)
        gamma_pad = jnp.pad(gamma.astype(jnp.float32), (0, c_pad - out_ch))
        beta_pad = jnp.pad(beta.astype(jnp.float32), (0, c_pad - out_ch))
        scale = gamma_pad * inv_std
        shift = beta_pad - mean * scale   # conv bias is cancelled by mean subtraction
        ss = jnp.zeros((8, c_pad), jnp.float32).at[0].set(scale).at[1].set(shift)

        # ---- Pass 2: apply scale/shift + LeakyReLU -----------------------------
        out_pad = pl.pallas_call(
            _bn_lrelu_kernel,
            out_shape=jax.ShapeDtypeStruct((m_pad, c_pad), jnp.float32),
            grid=(grid_m,),
            in_specs=[
                pl.BlockSpec((tile_m, c_pad), lambda i: (i, 0)),
                pl.BlockSpec((8, c_pad), lambda i: (0, 0)),
            ],
            out_specs=pl.BlockSpec((tile_m, c_pad), lambda i: (i, 0)),
            compiler_params=pltpu.CompilerParams(
                dimension_semantics=("parallel",)),
        )(conv_pad, ss)
    else:
        bias_pad = jnp.pad(bias.astype(jnp.float32), (0, c_pad - out_ch))
        b_block = jnp.zeros((8, c_pad), jnp.float32).at[0].set(bias_pad)
        out_pad = pl.pallas_call(
            _conv_bias_lrelu_kernel,
            out_shape=jax.ShapeDtypeStruct((m_pad, c_pad), jnp.float32),
            grid=(grid_m, grid_k),
            in_specs=[
                pl.BlockSpec((tile_m, tile_k), lambda i, kk: (i, kk)),
                pl.BlockSpec((tile_k, c_pad), lambda i, kk: (kk, 0)),
                pl.BlockSpec((8, c_pad), lambda i, kk: (0, 0)),
            ],
            out_specs=pl.BlockSpec((tile_m, c_pad), lambda i, kk: (i, 0)),
            compiler_params=pltpu.CompilerParams(
                dimension_semantics=("parallel", "arbitrary")),
        )(x_cols, w_mat, b_block)

    # Strip padding: (M_pad, C_pad) -> (N, OH, OW, C) -> NCHW (tiny boundary transpose).
    out = out_pad[:m, :out_ch].reshape(n, oh, ow, out_ch)
    return jnp.transpose(out, (0, 3, 1, 2))


# ---------------------------------------------------------------------------
# Pure-JAX reference (sanity check)
# ---------------------------------------------------------------------------
def _reference(x, weight, bias, gamma, beta, *, stride=2, use_batchnorm=True):
    conv = jax.lax.conv_general_dilated(
        x.astype(jnp.float32), weight.astype(jnp.float32),
        window_strides=(stride, stride), padding=((PAD, PAD), (PAD, PAD)),
        dimension_numbers=("NCHW", "OIHW", "NCHW"),
    ) + bias.reshape(1, -1, 1, 1)
    if use_batchnorm:
        mean = jnp.mean(conv, axis=(0, 2, 3), keepdims=True)
        var = jnp.mean((conv - mean) ** 2, axis=(0, 2, 3), keepdims=True)
        conv = (conv - mean) * jax.lax.rsqrt(var + EPS)
        conv = conv * gamma.reshape(1, -1, 1, 1) + beta.reshape(1, -1, 1, 1)
    return jnp.where(conv >= 0, conv, NEG_SLOPE * conv)


if __name__ == "__main__":
    # Small shapes consistent with the module: N=2, in_ch=4, H=W=16, out_ch=8, stride=2.
    N, IN_CH, H, W = 2, 4, 16, 16
    OUT_CH = 8
    STRIDE = 2

    key = jax.random.PRNGKey(0)
    kx, kw, kb = jax.random.split(key, 3)
    x = jax.random.normal(kx, (N, IN_CH, H, W), dtype=jnp.float32)
    weight = jax.random.normal(kw, (OUT_CH, IN_CH, KH, KW), dtype=jnp.float32) * 0.1
    bias = jax.random.normal(kb, (OUT_CH,), dtype=jnp.float32) * 0.1
    gamma = jnp.ones((OUT_CH,), dtype=jnp.float32)   # BatchNorm2d default weight
    beta = jnp.zeros((OUT_CH,), dtype=jnp.float32)   # BatchNorm2d default bias

    # BatchNorm path.
    out_bn = jax.block_until_ready(
        conv_block_forward(x, weight, bias, gamma, beta,
                           stride=STRIDE, use_batchnorm=True))
    ref_bn = _reference(x, weight, bias, gamma, beta, stride=STRIDE, use_batchnorm=True)
    assert out_bn.shape == (N, OUT_CH, H // STRIDE, W // STRIDE), out_bn.shape
    assert jnp.allclose(out_bn, ref_bn, rtol=1e-4, atol=1e-4), \
        float(jnp.max(jnp.abs(out_bn - ref_bn)))

    # No-BatchNorm path (conv + bias + LeakyReLU).
    out_nb = jax.block_until_ready(
        conv_block_forward(x, weight, bias, gamma, beta,
                           stride=STRIDE, use_batchnorm=False))
    ref_nb = _reference(x, weight, bias, gamma, beta, stride=STRIDE, use_batchnorm=False)
    assert out_nb.shape == (N, OUT_CH, H // STRIDE, W // STRIDE), out_nb.shape
    assert jnp.allclose(out_nb, ref_nb, rtol=1e-4, atol=1e-4), \
        float(jnp.max(jnp.abs(out_nb - ref_nb)))

    print("KERNEL_OK")
</pallas_src>

<mosaic_0001>
module attributes {stable_mosaic.version = 11 : i64} {
  func.func @_conv_stats_kernel(%arg0: i32, %arg1: i32, %arg2: memref<128x128xf32, #tpu.memory_space<vmem>>, %arg3: memref<128x128xf32, #tpu.memory_space<vmem>>, %arg4: memref<128x128xf32, #tpu.memory_space<vmem>>, %arg5: memref<8x128xf32, #tpu.memory_space<vmem>>) attributes {dimension_semantics = [#tpu.dimension_semantics<parallel>, #tpu.dimension_semantics<arbitrary>], iteration_bounds = array<i64: 1, 1>, scalar_prefetch = 0 : i64, scratch_operands = 0 : i64, tpu.core_type = #tpu.core_type<tc>, window_params = [{transform_indices = @transform_0, window_bounds = array<i64: 128, 128>}, {transform_indices = @transform_1, window_bounds = array<i64: 128, 128>}, {transform_indices = @transform_2, window_bounds = array<i64: 128, 128>}, {transform_indices = @transform_3, window_bounds = array<i64: 8, 128>}]} {
    %c0_i32 = arith.constant 0 : i32
    %0 = arith.cmpi eq, %arg1, %c0_i32 : i32
    %1 = arith.extui %0 : i1 to i32
    %c0_i32_0 = arith.constant 0 : i32
    %2 = arith.cmpi ne, %1, %c0_i32_0 : i32
    scf.if %2 {
      %cst_10 = arith.constant 0.000000e+00 : f32
      %12 = vector.broadcast %cst_10 : f32 to vector<128x128xf32>
      %c0_11 = arith.constant 0 : index
      %c0_12 = arith.constant 0 : index
      %13 = vector.load %arg4[%c0_11, %c0_12] : memref<128x128xf32, #tpu.memory_space<vmem>>, vector<128x128xf32>
      tpu.vector_store %arg4[%c0_11, %c0_12], %12 {strides = array<i32>} : memref<128x128xf32, #tpu.memory_space<vmem>>, vector<128x128xf32>,
    } else {
    }
    %c0 = arith.constant 0 : index
    %c0_1 = arith.constant 0 : index
    %3 = vector.load %arg4[%c0, %c0_1] : memref<128x128xf32, #tpu.memory_space<vmem>>, vector<128x128xf32>
    %c0_2 = arith.constant 0 : index
    %c0_3 = arith.constant 0 : index
    %4 = vector.load %arg2[%c0_2, %c0_3] : memref<128x128xf32, #tpu.memory_space<vmem>>, vector<128x128xf32>
    %c0_4 = arith.constant 0 : index
    %c0_5 = arith.constant 0 : index
    %5 = vector.load %arg3[%c0_4, %c0_5] : memref<128x128xf32, #tpu.memory_space<vmem>>, vector<128x128xf32>
    %cst = arith.constant dense<0.000000e+00> : vector<128x128xf32>
    %6 = tpu.matmul %4, %5, %cst {dimension_numbers = #tpu.dot_dimension_numbers<[1], [0], [0], [1], [0, 0, 1, 1], [], []>} : vector<128x128xf32>, vector<128x128xf32>, vector<128x128xf32> -> vector<128x128xf32>
    %7 = arith.addf %3, %6 : vector<128x128xf32>
    %c0_6 = arith.constant 0 : index
    %c0_7 = arith.constant 0 : index
    %8 = vector.load %arg4[%c0_6, %c0_7] : memref<128x128xf32, #tpu.memory_space<vmem>>, vector<128x128xf32>
    tpu.vector_store %arg4[%c0_6, %c0_7], %7 {strides = array<i32>} : memref<128x128xf32, #tpu.memory_space<vmem>>, vector<128x128xf32>,
    %c0_i32_8 = arith.constant 0 : i32
    %9 = arith.cmpi eq, %arg1, %c0_i32_8 : i32
    %10 = arith.extui %9 : i1 to i32
    %c0_i32_9 = arith.constant 0 : i32
    %11 = arith.cmpi ne, %10, %c0_i32_9 : i32
    scf.if %11 {
      %c0_10 = arith.constant 0 : index
      %c0_11 = arith.constant 0 : index
      %12 = vector.load %arg4[%c0_10, %c0_11] : memref<128x128xf32, #tpu.memory_space<vmem>>, vector<128x128xf32>
      %cst_12 = arith.constant 0.000000e+00 : f32
      %13 = vector.broadcast %cst_12 : f32 to vector<8x128xf32>
      %c0_13 = arith.constant 0 : index
      %c0_14 = arith.constant 0 : index
      %14 = vector.load %arg5[%c0_13, %c0_14] : memref<8x128xf32, #tpu.memory_space<vmem>>, vector<8x128xf32>
      tpu.vector_store %arg5[%c0_13, %c0_14], %13 {strides = array<i32>} : memref<8x128xf32, #tpu.memory_space<vmem>>, vector<8x128xf32>,
      %cst_15 = arith.constant dense<0.000000e+00> : vector<128xf32>
      %15 = vector.multi_reduction <add>, %12, %cst_15 [0] : vector<128x128xf32> to vector<128xf32>
      %16 = vector.shape_cast %15 : vector<128xf32> to vector<1x128xf32>
      %c0_16 = arith.constant 0 : index
      %c0_17 = arith.constant 0 : index
      %17 = vector.load %arg5[%c0_16, %c0_17] : memref<8x128xf32, #tpu.memory_space<vmem>>, vector<1x128xf32>
      tpu.vector_store %arg5[%c0_16, %c0_17], %16 {strides = array<i32>} : memref<8x128xf32, #tpu.memory_space<vmem>>, vector<1x128xf32>,
      %18 = arith.mulf %12, %12 : vector<128x128xf32>
      %cst_18 = arith.constant dense<0.000000e+00> : vector<128xf32>
      %19 = vector.multi_reduction <add>, %18, %cst_18 [0] : vector<128x128xf32> to vector<128xf32>
      %20 = vector.shape_cast %19 : vector<128xf32> to vector<1x128xf32>
      %c1 = arith.constant 1 : index
      %c0_19 = arith.constant 0 : index
      %21 = vector.load %arg5[%c1, %c0_19] : memref<8x128xf32, #tpu.memory_space<vmem>>, vector<1x128xf32>
      tpu.vector_store %arg5[%c1, %c0_19], %20 {strides = array<i32>} : memref<8x128xf32, #tpu.memory_space<vmem>>, vector<1x128xf32>,
    } else {
    }
    return
  }
  func.func @transform_0(%arg0: i32, %arg1: i32) -> (i32, i32) {
    %c0_i32 = arith.constant 0 : i32
    return %arg0, %arg1 : i32, i32
  }
  func.func @transform_1(%arg0: i32, %arg1: i32) -> (i32, i32) {
    %c0_i32 = arith.constant 0 : i32
    %c0_i32_0 = arith.constant 0 : i32
    return %arg1, %c0_i32 : i32, i32
  }
  func.func @transform_2(%arg0: i32, %arg1: i32) -> (i32, i32) {
    %c0_i32 = arith.constant 0 : i32
    %c0_i32_0 = arith.constant 0 : i32
    return %arg0, %c0_i32 : i32, i32
  }
  func.func @transform_3(%arg0: i32, %arg1: i32) -> (i32, i32) {
    %c0_i32 = arith.constant 0 : i32
    %c0_i32_0 = arith.constant 0 : i32
    return %arg0, %c0_i32 : i32, i32
  }
}

</mosaic_0001>

<llo_original>
// kernel: tpu_custom_call.1
$region0: #{tpu_custom_call.1}
  #allocation0 [shape = 'u32[]', space=smem, size = 0x4, offset = 0x4, fixed_abs, tag = 'smem constant byte address 0x4 - core index']
  #allocation1 [shape = 'u32[144,128]{1,0:T(1,128)}', space=vmem, size = 0x12000, scoped, tag = 'internal scratch']
  %s0 = inlined_call_operand.hbm [shape: f32[128,128], index: 0, kind: input, shape index: {}]
  %s1 = inlined_call_operand.hbm [shape: f32[128,128], index: 1, kind: input, shape index: {}]
  %s2 = inlined_call_operand.hbm [shape: f32[128,128], index: 2, kind: output, shape index: {0}]
  %s3 = inlined_call_operand.hbm [shape: f32[8,128], index: 3, kind: output, shape index: {1}]
  %4 = xla_tuple %s2, %s3
  %s5 = sld [smem:[#allocation0]]
  $region42: #{tpu_custom_call.1} parent=0
    _
  %s7 = ssub.s32 1, %s5
  %s8 = scalar_select 0, %s7, %s5
  $region1: #{tpu_custom_call.1} parent=0
    #allocation2 [shape = 'u8[65536]{0}', space=vmem, size = 0x10000, scoped, tag = 'input window, operand 0, single buffered']
    #allocation3 [shape = 's32[1]{0}', space=sflag, size = 0x4, scoped, tag = 'scoped memory for tpu_custom_call.1']
    #allocation4 [shape = 's32[1]{0}', space=sflag, size = 0x4, scoped, tag = 'scoped memory for tpu_custom_call.1']
    #allocation5 [shape = 'u8[65536]{0}', space=vmem, size = 0x10000, scoped, tag = 'input window, operand 1, single buffered']
    #allocation6 [shape = 's32[1]{0}', space=sflag, size = 0x4, scoped, tag = 'scoped memory for tpu_custom_call.1']
    #allocation7 [shape = 'u8[65536]{0}', space=vmem, size = 0x10000, scoped, tag = 'output window, operand 0, single buffered']
    #allocation8 [shape = 'u8[4096]{0}', space=vmem, size = 0x1000, scoped, tag = 'output window, operand 1, single buffered']
    #allocation9 [shape = 's32[1]{0}', space=sflag, size = 0x4, scoped, tag = 'scoped memory for tpu_custom_call.1']
    %9 = vsyncpa [#allocation3], 0
    %10 = vsyncpa [#allocation6], 0
    %11 = vsyncpa [#allocation4], 0
    %12 = vsyncpa [#allocation9], 0
    // Predicated region
    $region2: #{tpu_custom_call.1} parent=1 // pred_check
      _
    $region3: #{tpu_custom_call.1} parent=1 // pred_check_branch
      %14 = sbr.rel (0) target = $region5
    $region4: #{tpu_custom_call.1} parent=1 // pred_region
      %s16 = ssub.s32 2048, 2048
      %17 = vsyncadd [#allocation3], %s16
      %s18 = sshll.u32 [#allocation2], 4
      %s19 = int_to_ptr.vmem [resolvable:$true] %s18
      %24 = dma.hbm_to_vmem [thread:$0]  %s0, 2048, %s19, [#allocation3], 128, 128, 8
    $region5: #{tpu_custom_call.1} parent=1 // pred_fallthru
      _
    // Predicated region
    $region6: #{tpu_custom_call.1} parent=1 // pred_check
      _
    $region7: #{tpu_custom_call.1} parent=1 // pred_check_branch
      %26 = sbr.rel (0) target = $region9
    $region8: #{tpu_custom_call.1} parent=1 // pred_region
      %s28 = ssub.s32 2048, 2048
      %29 = vsyncadd [#allocation6], %s28
      %s30 = sshll.u32 [#allocation5], 4
      %s31 = int_to_ptr.vmem [resolvable:$true] %s30
      %36 = dma.hbm_to_vmem [thread:$0]  %s1, 2048, %s31, [#allocation6], 128, 128, 8
    $region9: #{tpu_custom_call.1} parent=1 // pred_fallthru
      _
    // Predicated region
    $region10: #{tpu_custom_call.1} parent=1 // pred_check
      _
    $region11: #{tpu_custom_call.1} parent=1 // pred_check_branch
      %38 = sbr.rel (0) target = $region13
    $region12: #{tpu_custom_call.1} parent=1 // pred_region
      %39 = dma.done [#allocation3], 2048
    $region13: #{tpu_custom_call.1} parent=1 // pred_fallthru
      _
    // Predicated region
    $region14: #{tpu_custom_call.1} parent=1 // pred_check
      _
    $region15: #{tpu_custom_call.1} parent=1 // pred_check_branch
      %41 = sbr.rel (0) target = $region17
    $region16: #{tpu_custom_call.1} parent=1 // pred_region
      %42 = dma.done [#allocation6], 2048
    $region17: #{tpu_custom_call.1} parent=1 // pred_fallthru
      _
    %p43 = scmp.eq.s32.totalorder 0, 0
    // Predicated region
    $region18: #{tpu_custom_call.1} parent=1 // pred_check
      %p44 = pneg %p43
    $region19: #{tpu_custom_call.1} parent=1 // pred_check_branch
      %46 = sbr.rel (%p44) target = $region21
    $region20: #{tpu_custom_call.1} parent=1 // pred_region
      %47 = vst [vmem:[#allocation7] sm:$0xff] 0.0
      %48 = vst [vmem:[#allocation7 + $0x8] sm:$0xff] 0.0
      %49 = vst [vmem:[#allocation7 + $0x10] sm:$0xff] 0.0
      %50 = vst [vmem:[#allocation7 + $0x18] sm:$0xff] 0.0
      %51 = vst [vmem:[#allocation7 + $0x20] sm:$0xff] 0.0
      %52 = vst [vmem:[#allocation7 + $0x28] sm:$0xff] 0.0
      %53 = vst [vmem:[#allocation7 + $0x30] sm:$0xff] 0.0
      %54 = vst [vmem:[#allocation7 + $0x38] sm:$0xff] 0.0
      %55 = vst [vmem:[#allocation7 + $0x40] sm:$0xff] 0.0
      %56 = vst [vmem:[#allocation7 + $0x48] sm:$0xff] 0.0
      %57 = vst [vmem:[#allocation7 + $0x50] sm:$0xff] 0.0
      %58 = vst [vmem:[#allocation7 + $0x58] sm:$0xff] 0.0
      %59 = vst [vmem:[#allocation7 + $0x60] sm:$0xff] 0.0
      %60 = vst [vmem:[#allocation7 + $0x68] sm:$0xff] 0.0
      %61 = vst [vmem:[#allocation7 + $0x70] sm:$0xff] 0.0
      %62 = vst [vmem:[#allocation7 + $0x78] sm:$0xff] 0.0
    $region21: #{tpu_custom_call.1} parent=1 // pred_fallthru
      _
    %v63 = vld [vmem:[#allocation7] sm:$0xff]
    %v64 = vld [vmem:[#allocation7 + $0x8] sm:$0xff]
    %v65 = vld [vmem:[#allocation7 + $0x10] sm:$0xff]
    %v66 = vld [vmem:[#allocation7 + $0x18] sm:$0xff]
    %v67 = vld [vmem:[#allocation7 + $0x20] sm:$0xff]
    %v68 = vld [vmem:[#allocation7 + $0x28] sm:$0xff]
    %v69 = vld [vmem:[#allocation7 + $0x30] sm:$0xff]
    %v70 = vld [vmem:[#allocation7 + $0x38] sm:$0xff]
    %v71 = vld [vmem:[#allocation7 + $0x40] sm:$0xff]
    %v72 = vld [vmem:[#allocation7 + $0x48] sm:$0xff]
    %v73 = vld [vmem:[#allocation7 + $0x50] sm:$0xff]
    %v74 = vld [vmem:[#allocation7 + $0x58] sm:$0xff]
    %v75 = vld [vmem:[#allocation7 + $0x60] sm:$0xff]
    %v76 = vld [vmem:[#allocation7 + $0x68] sm:$0xff]
    %v77 = vld [vmem:[#allocation7 + $0x70] sm:$0xff]
    %v78 = vld [vmem:[#allocation7 + $0x78] sm:$0xff]
    %v79 = vld [vmem:[#allocation2] sm:$0xff]
    %v80 = vld [vmem:[#allocation2 + $0x8] sm:$0xff]
    %v81 = vld [vmem:[#allocation2 + $0x10] sm:$0xff]
    %v82 = vld [vmem:[#allocation2 + $0x18] sm:$0xff]
    %v83 = vld [vmem:[#allocation2 + $0x20] sm:$0xff]
    %v84 = vld [vmem:[#allocation2 + $0x28] sm:$0xff]
    %v85 = vld [vmem:[#allocation2 + $0x30] sm:$0xff]
    %v86 = vld [vmem:[#allocation2 + $0x38] sm:$0xff]
    %v87 = vld [vmem:[#allocation2 + $0x40] sm:$0xff]
    %v88 = vld [vmem:[#allocation2 + $0x48] sm:$0xff]
    %v89 = vld [vmem:[#allocation2 + $0x50] sm:$0xff]
    %v90 = vld [vmem:[#allocation2 + $0x58] sm:$0xff]
    %v91 = vld [vmem:[#allocation2 + $0x60] sm:$0xff]
    %v92 = vld [vmem:[#allocation2 + $0x68] sm:$0xff]
    %v93 = vld [vmem:[#allocation2 + $0x70] sm:$0xff]
    %v94 = vld [vmem:[#allocation2 + $0x78] sm:$0xff]
    %v95 = vld [vmem:[#allocation5] sm:$0xff]
    %v96 = vld [vmem:[#allocation5 + $0x8] sm:$0xff]
    %v97 = vld [vmem:[#allocation5 + $0x10] sm:$0xff]
    %v98 = vld [vmem:[#allocation5 + $0x18] sm:$0xff]
    %v99 = vld [vmem:[#allocation5 + $0x20] sm:$0xff]
    %v100 = vld [vmem:[#allocation5 + $0x28] sm:$0xff]
    %v101 = vld [vmem:[#allocation5 + $0x30] sm:$0xff]
    %v102 = vld [vmem:[#allocation5 + $0x38] sm:$0xff]
    %v103 = vld [vmem:[#allocation5 + $0x40] sm:$0xff]
    %v104 = vld [vmem:[#allocation5 + $0x48] sm:$0xff]
    %v105 = vld [vmem:[#allocation5 + $0x50] sm:$0xff]
    %v106 = vld [vmem:[#allocation5 + $0x58] sm:$0xff]
    %v107 = vld [vmem:[#allocation5 + $0x60] sm:$0xff]
    %v108 = vld [vmem:[#allocation5 + $0x68] sm:$0xff]
    %v109 = vld [vmem:[#allocation5 + $0x70] sm:$0xff]
    %v110 = vld [vmem:[#allocation5 + $0x78] sm:$0xff]
    %111 = vmatprep.subr.mxu0 0.0
    %112 = vmatpush1.msra.mxu0 %v95
    %113 = vmatprep.subr.mxu0 0.0
    %114 = vmatpush1.msra.mxu0 %v96
    %115 = vmatprep.subr.mxu0 0.0
    %116 = vmatpush1.msra.mxu0 %v97
    %117 = vmatprep.subr.mxu0 0.0
    %118 = vmatpush1.msra.mxu0 %v98
    %119 = vmatprep.subr.mxu0 0.0
    %120 = vmatpush1.msra.mxu0 %v99
    %121 = vmatprep.subr.mxu0 0.0
    %122 = vmatpush1.msra.mxu0 %v100
    %123 = vmatprep.subr.mxu0 0.0
    %124 = vmatpush1.msra.mxu0 %v101
    %125 = vmatprep.subr.mxu0 0.0
    %126 = vmatpush1.msra.mxu0 %v102
    %127 = vmatprep.subr.mxu0 0.0
    %128 = vmatpush1.msra.mxu0 %v103
    %129 = vmatprep.subr.mxu0 0.0
    %130 = vmatpush1.msra.mxu0 %v104
    %131 = vmatprep.subr.mxu0 0.0
    %132 = vmatpush1.msra.mxu0 %v105
    %133 = vmatprep.subr.mxu0 0.0
    %134 = vmatpush1.msra.mxu0 %v106
    %135 = vmatprep.subr.mxu0 0.0
    %136 = vmatpush1.msra.mxu0 %v107
    %137 = vmatprep.subr.mxu0 0.0
    %138 = vmatpush1.msra.mxu0 %v108
    %139 = vmatprep.subr.mxu0 0.0
    %140 = vmatpush1.msra.mxu0 %v109
    %141 = vmatprep.subr.mxu0 0.0
    %142 = vmatpush1.msra.mxu0 %v110
    %143 = vmatprep.subr.mxu0 0.0
    %144 = vmatpush1.msra.mxu0 0.0
    %145 = vmatprep.subr.mxu0 0.0
    %146 = vmatpush1.msra.mxu0 0.0
    %147 = vmatprep.subr.mxu0 0.0
    %148 = vmatpush1.msra.mxu0 0.0
    %149 = vmatprep.subr.mxu0 0.0
    %150 = vmatpush1.msra.mxu0 0.0
    %151 = vmatprep.subr.mxu0 0.0
    %152 = vmatpush1.msra.mxu0 0.0
    %153 = vmatprep.subr.mxu0 0.0
    %154 = vmatpush1.msra.mxu0 0.0
    %155 = vmatprep.subr.mxu0 0.0
    %156 = vmatpush1.msra.mxu0 0.0
    %157 = vmatprep.subr.mxu0 0.0
    %158 = vmatpush1.msra.mxu0 0.0
    %159 = vmatprep.subr.mxu0 0.0
    %160 = vmatpush1.msra.mxu0 0.0
    %161 = vmatprep.subr.mxu0 0.0
    %162 = vmatpush1.msra.mxu0 0.0
    %163 = vmatprep.subr.mxu0 0.0
    %164 = vmatpush1.msra.mxu0 0.0
    %165 = vmatprep.subr.mxu0 0.0
    %166 = vmatpush1.msra.mxu0 0.0
    %167 = vmatprep.subr.mxu0 0.0
    %168 = vmatpush1.msra.mxu0 0.0
    %169 = vmatprep.subr.mxu0 0.0
    %170 = vmatpush1.msra.mxu0 0.0
    %171 = vmatprep.subr.mxu0 0.0
    %172 = vmatpush1.msra.mxu0 0.0
    %173 = vmatprep.subr.mxu0 0.0
    %174 = vmatpush1.msra.mxu0 0.0
    %175 = vmatprep.mubr.f32.mxu0 0.0
    %176 = vmatmul.mubr.f32.gmra.mrb[0].mxu0 %v79
    %v177 = vpop.f32.mrb[0].mxu0
    %v178 = vadd.f32 0.0, %v177
    %v179 = vpop.f32.mrb[0].mxu0
    %180 = vmatprep.mubr.f32.mxu0 0.0
    %181 = vmatmul.mubr.f32.gmra.mrb[0].mxu0 %v80
    %v182 = vpop.f32.mrb[0].mxu0
    %v183 = vadd.f32 0.0, %v182
    %v184 = vpop.f32.mrb[0].mxu0
    %185 = vmatprep.mubr.f32.mxu0 0.0
    %186 = vmatmul.mubr.f32.gmra.mrb[0].mxu0 %v81
    %v187 = vpop.f32.mrb[0].mxu0
    %v188 = vadd.f32 0.0, %v187
    %v189 = vpop.f32.mrb[0].mxu0
    %190 = vmatprep.mubr.f32.mxu0 0.0
    %191 = vmatmul.mubr.f32.gmra.mrb[0].mxu0 %v82
    %v192 = vpop.f32.mrb[0].mxu0
    %v193 = vadd.f32 0.0, %v192
    %v194 = vpop.f32.mrb[0].mxu0
    %195 = vmatprep.mubr.f32.mxu0 0.0
    %196 = vmatmul.mubr.f32.gmra.mrb[0].mxu0 %v83
    %v197 = vpop.f32.mrb[0].mxu0
    %v198 = vadd.f32 0.0, %v197
    %v199 = vpop.f32.mrb[0].mxu0
    %200 = vmatprep.mubr.f32.mxu0 0.0
    %201 = vmatmul.mubr.f32.gmra.mrb[0].mxu0 %v84
    %v202 = vpop.f32.mrb[0].mxu0
    %v203 = vadd.f32 0.0, %v202
    %v204 = vpop.f32.mrb[0].mxu0
    %205 = vmatprep.mubr.f32.mxu0 0.0
    %206 = vmatmul.mubr.f32.gmra.mrb[0].mxu0 %v85
    %v207 = vpop.f32.mrb[0].mxu0
    %v208 = vadd.f32 0.0, %v207
    %v209 = vpop.f32.mrb[0].mxu0
    %210 = vmatprep.mubr.f32.mxu0 0.0
    %211 = vmatmul.mubr.f32.gmra.mrb[0].mxu0 %v86
    %v212 = vpop.f32.mrb[0].mxu0
    %v213 = vadd.f32 0.0, %v212
    %v214 = vpop.f32.mrb[0].mxu0
    %215 = vmatprep.mubr.f32.mxu0 0.0
    %216 = vmatmul.mubr.f32.gmra.mrb[0].mxu0 %v87
    %v217 = vpop.f32.mrb[0].mxu0
    %v218 = vadd.f32 0.0, %v217
    %v219 = vpop.f32.mrb[0].mxu0
    %220 = vmatprep.mubr.f32.mxu0 0.0
    %221 = vmatmul.mubr.f32.gmra.mrb[0].mxu0 %v88
    %v222 = vpop.f32.mrb[0].mxu0
    %v223 = vadd.f32 0.0, %v222
    %v224 = vpop.f32.mrb[0].mxu0
    %225 = vmatprep.mubr.f32.mxu0 0.0
    %226 = vmatmul.mubr.f32.gmra.mrb[0].mxu0 %v89
    %v227 = vpop.f32.mrb[0].mxu0
    %v228 = vadd.f32 0.0, %v227
    %v229 = vpop.f32.mrb[0].mxu0
    %230 = vmatprep.mubr.f32.mxu0 0.0
    %231 = vmatmul.mubr.f32.gmra.mrb[0].mxu0 %v90
    %v232 = vpop.f32.mrb[0].mxu0
    %v233 = vadd.f32 0.0, %v232
    %v234 = vpop.f32.mrb[0].mxu0
    %235 = vmatprep.mubr.f32.mxu0 0.0
    %236 = vmatmul.mubr.f32.gmra.mrb[0].mxu0 %v91
    %v237 = vpop.f32.mrb[0].mxu0
    %v238 = vadd.f32 0.0, %v237
    %v239 = vpop.f32.mrb[0].mxu0
    %240 = vmatprep.mubr.f32.mxu0 0.0
    %241 = vmatmul.mubr.f32.gmra.mrb[0].mxu0 %v92
    %v242 = vpop.f32.mrb[0].mxu0
    %v243 = vadd.f32 0.0, %v242
    %v244 = vpop.f32.mrb[0].mxu0
    %245 = vmatprep.mubr.f32.mxu0 0.0
    %246 = vmatmul.mubr.f32.gmra.mrb[0].mxu0 %v93
    %v247 = vpop.f32.mrb[0].mxu0
    %v248 = vadd.f32 0.0, %v247
    %v249 = vpop.f32.mrb[0].mxu0
    %250 = vmatprep.mubr.f32.mxu0 0.0
    %251 = vmatmul.mubr.f32.gmra.mrb[0].mxu0 %v94
    %v252 = vpop.f32.mrb[0].mxu0
    %v253 = vadd.f32 0.0, %v252
    %v254 = vpop.f32.mrb[0].mxu0
    %255 = vdwg.mxu0
    %v256 = vadd.f32 %v63, %v178
    %v257 = vadd.f32 %v64, %v183
    %v258 = vadd.f32 %v65, %v188
    %v259 = vadd.f32 %v66, %v193
    %v260 = vadd.f32 %v67, %v198
    %v261 = vadd.f32 %v68, %v203
    %v262 = vadd.f32 %v69, %v208
    %v263 = vadd.f32 %v70, %v213
    %v264 = vadd.f32 %v71, %v218
    %v265 = vadd.f32 %v72, %v223
    %v266 = vadd.f32 %v73, %v228
    %v267 = vadd.f32 %v74, %v233
    %v268 = vadd.f32 %v75, %v238
    %v269 = vadd.f32 %v76, %v243
    %v270 = vadd.f32 %v77, %v248
    %v271 = vadd.f32 %v78, %v253
    %272 = vst [vmem:[#allocation7] sm:$0xff] %v256
    %273 = vst [vmem:[#allocation7 + $0x8] sm:$0xff] %v257
    %274 = vst [vmem:[#allocation7 + $0x10] sm:$0xff] %v258
    %275 = vst [vmem:[#allocation7 + $0x18] sm:$0xff] %v259
    %276 = vst [vmem:[#allocation7 + $0x20] sm:$0xff] %v260
    %277 = vst [vmem:[#allocation7 + $0x28] sm:$0xff] %v261
    %278 = vst [vmem:[#allocation7 + $0x30] sm:$0xff] %v262
    %279 = vst [vmem:[#allocation7 + $0x38] sm:$0xff] %v263
    %280 = vst [vmem:[#allocation7 + $0x40] sm:$0xff] %v264
    %281 = vst [vmem:[#allocation7 + $0x48] sm:$0xff] %v265
    %282 = vst [vmem:[#allocation7 + $0x50] sm:$0xff] %v266
    %283 = vst [vmem:[#allocation7 + $0x58] sm:$0xff] %v267
    %284 = vst [vmem:[#allocation7 + $0x60] sm:$0xff] %v268
    %285 = vst [vmem:[#allocation7 + $0x68] sm:$0xff] %v269
    %286 = vst [vmem:[#allocation7 + $0x70] sm:$0xff] %v270
    %287 = vst [vmem:[#allocation7 + $0x78] sm:$0xff] %v271
    // Predicated region
    $region22: #{tpu_custom_call.1} parent=1 // pred_check
      %p288 = pneg %p43
    $region23: #{tpu_custom_call.1} parent=1 // pred_check_branch
      %290 = sbr.rel (%p288) target = $region25
    $region24: #{tpu_custom_call.1} parent=1 // pred_region
      %v291 = vld [vmem:[#allocation7] sm:$0xff]
      %v292 = vld [vmem:[#allocation7 + $0x8] sm:$0xff]
      %v293 = vld [vmem:[#allocation7 + $0x10] sm:$0xff]
      %v294 = vld [vmem:[#allocation7 + $0x18] sm:$0xff]
      %v295 = vld [vmem:[#allocation7 + $0x20] sm:$0xff]
      %v296 = vld [vmem:[#allocation7 + $0x28] sm:$0xff]
      %v297 = vld [vmem:[#allocation7 + $0x30] sm:$0xff]
      %v298 = vld [vmem:[#allocation7 + $0x38] sm:$0xff]
      %v299 = vld [vmem:[#allocation7 + $0x40] sm:$0xff]
      %v300 = vld [vmem:[#allocation7 + $0x48] sm:$0xff]
      %v301 = vld [vmem:[#allocation7 + $0x50] sm:$0xff]
      %v302 = vld [vmem:[#allocation7 + $0x58] sm:$0xff]
      %v303 = vld [vmem:[#allocation7 + $0x60] sm:$0xff]
      %v304 = vld [vmem:[#allocation7 + $0x68] sm:$0xff]
      %v305 = vld [vmem:[#allocation7 + $0x70] sm:$0xff]
      %v306 = vld [vmem:[#allocation7 + $0x78] sm:$0xff]
      %307 = vst [vmem:[#allocation8] sm:$0xff] 0.0
      %v308 = vadd.f32 %v291, %v292
      %v309 = vadd.f32 %v308, %v293
      %v310 = vadd.f32 %v309, %v294
      %v311 = vadd.f32 %v310, %v295
      %v312 = vadd.f32 %v311, %v296
      %v313 = vadd.f32 %v312, %v297
      %v314 = vadd.f32 %v313, %v298
      %v315 = vadd.f32 %v314, %v299
      %v316 = vadd.f32 %v315, %v300
      %v317 = vadd.f32 %v316, %v301
      %v318 = vadd.f32 %v317, %v302
      %v319 = vadd.f32 %v318, %v303
      %v320 = vadd.f32 %v319, %v304
      %v321 = vadd.f32 %v320, %v305
      %v322 = vadd.f32 %v321, %v306
      %v323 = vrot.slane %v322, 4
      %v324 = vadd.f32 %v322, %v323
      %v325 = vrot.slane %v324, 2
      %v326 = vadd.f32 %v324, %v325
      %v327 = vrot.slane %v326, 1
      %v328 = vadd.f32 %v326, %v327
      %329 = vst [vmem:[#allocation8] sm:$0x1] %v328
      %v330 = vmul.f32 %v291, %v291
      %v331 = vmul.f32 %v292, %v292
      %v332 = vmul.f32 %v293, %v293
      %v333 = vmul.f32 %v294, %v294
      %v334 = vmul.f32 %v295, %v295
      %v335 = vmul.f32 %v296, %v296
      %v336 = vmul.f32 %v297, %v297
      %v337 = vmul.f32 %v298, %v298
      %v338 = vmul.f32 %v299, %v299
      %v339 = vmul.f32 %v300, %v300
      %v340 = vmul.f32 %v301, %v301
      %v341 = vmul.f32 %v302, %v302
      %v342 = vmul.f32 %v303, %v303
      %v343 = vmul.f32 %v304, %v304
      %v344 = vmul.f32 %v305, %v305
      %v345 = vmul.f32 %v306, %v306
      %v346 = vadd.f32 %v330, %v331
      %v347 = vadd.f32 %v346, %v332
      %v348 = vadd.f32 %v347, %v333
      %v349 = vadd.f32 %v348, %v334
      %v350 = vadd.f32 %v349, %v335
      %v351 = vadd.f32 %v350, %v336
      %v352 = vadd.f32 %v351, %v337
      %v353 = vadd.f32 %v352, %v338
      %v354 = vadd.f32 %v353, %v339
      %v355 = vadd.f32 %v354, %v340
      %v356 = vadd.f32 %v355, %v341
      %v357 = vadd.f32 %v356, %v342
      %v358 = vadd.f32 %v357, %v343
      %v359 = vadd.f32 %v358, %v344
      %v360 = vadd.f32 %v359, %v345
      %v361 = vrot.slane %v360, 4
      %v362 = vadd.f32 %v360, %v361
      %v363 = vrot.slane %v362, 2
      %v364 = vadd.f32 %v362, %v363
      %v365 = vrot.slane %v364, 1
      %v366 = vadd.f32 %v364, %v365
      %367 = vst [vmem:[#allocation8 + $0x1] sm:$0x1] %v366
    $region25: #{tpu_custom_call.1} parent=1 // pred_fallthru
      _
    // Predicated region
    $region26: #{tpu_custom_call.1} parent=1 // pred_check
      _
    $region27: #{tpu_custom_call.1} parent=1 // pred_check_branch
      %369 = sbr.rel (0) target = $region29
    $region28: #{tpu_custom_call.1} parent=1 // pred_region
      %s371 = ssub.s32 2048, 2048
      %372 = vsyncadd [#allocation4], %s371
      %s373 = sshll.u32 [#allocation7], 4
      %s374 = int_to_ptr.vmem [resolvable:$true] %s373
      %379 = dma.vmem_to_hbm [thread:$0]  %s374, 2048, %s2, [#allocation4], 128, 128, 8
    $region29: #{tpu_custom_call.1} parent=1 // pred_fallthru
      _
    // Predicated region
    $region30: #{tpu_custom_call.1} parent=1 // pred_check
      _
    $region31: #{tpu_custom_call.1} parent=1 // pred_check_branch
      %381 = sbr.rel (0) target = $region33
    $region32: #{tpu_custom_call.1} parent=1 // pred_region
      %s383 = ssub.s32 128, 128
      %384 = vsyncadd [#allocation9], %s383
      %s386 = sshll.u32 [#allocation8], 4
      %s387 = int_to_ptr.vmem [resolvable:$true] %s386
      %389 = dma.vmem_to_hbm [thread:$0]  %s387, 128, %s3, [#allocation9]
    $region33: #{tpu_custom_call.1} parent=1 // pred_fallthru
      _
    // Predicated region
    $region34: #{tpu_custom_call.1} parent=1 // pred_check
      _
    $region35: #{tpu_custom_call.1} parent=1 // pred_check_branch
      %391 = sbr.rel (0) target = $region37
    $region36: #{tpu_custom_call.1} parent=1 // pred_region
      %392 = dma.done [#allocation4], 2048
    $region37: #{tpu_custom_call.1} parent=1 // pred_fallthru
      _
    // Predicated region
    $region38: #{tpu_custom_call.1} parent=1 // pred_check
      _
    $region39: #{tpu_custom_call.1} parent=1 // pred_check_branch
      %394 = sbr.rel (0) target = $region41
    $region40: #{tpu_custom_call.1} parent=1 // pred_region
      %395 = dma.done [#allocation9], 128
    $region41: #{tpu_custom_call.1} parent=1 // pred_fallthru
      _
    %396 = vsyncpa [#allocation3], 1
    %397 = vsyncpa [#allocation6], 1
    %398 = vsyncpa [#allocation4], 1
    %399 = vsyncpa [#allocation9], 1

</llo_original>
